<compile_context>
chip_gen: v5e
topology: v5e:2x2
jax: 0.10.0
libtpu: 0.0.40
codegen_flags: <defaults>
</compile_context>

<pallas_src>
import jax
import jax.numpy as jnp
from jax.experimental import pallas as pl
from jax.experimental.pallas import tpu as pltpu

HID = 100        # logical hidden width (matches the PyTorch module)
HID_PAD = 128    # lane/sublane-aligned hidden width (zero-padded; padding stays 0)
LANE = 128       # batch-tile quantum (lane width)


def toy_mlp_kernel(x_ref, w1_ref, b1_ref, w3_ref, b3_ref, w5_ref, b5_ref,
                   w7_ref, b7_ref, o_ref):
    """Transposed MLP: activations are (hidden, batch_tile), batch on lanes."""
    x = x_ref[...]                                   # (2, TB) f32
    w1 = w1_ref[...]                                 # (128, 2) f32
    # ---- fc1 + tanh: K=2 -> VPU (two broadcast FMAs); keep the MXU free.
    h = jnp.tanh(w1[:, 0:1] * x[0:1, :]
                 + w1[:, 1:2] * x[1:2, :]
                 + b1_ref[...])                      # (128, TB) f32
    mm = w3_ref.dtype                                # f32, or bf16 pre-cast in wrapper
    # ---- fc3 + relu: exact 128x128 MXU tile, f32 accumulation.
    h = jnp.dot(w3_ref[...], h.astype(mm),
                preferred_element_type=jnp.float32) + b3_ref[...]
    h = jnp.maximum(h, 0.0)
    # ---- fc5 + relu
    h = jnp.dot(w5_ref[...], h.astype(mm),
                preferred_element_type=jnp.float32) + b5_ref[...]
    h = jnp.maximum(h, 0.0)
    # ---- fc7: 128 -> 1 as VPU multiply + sublane reduction. Result is one
    #      lane-dense (1, TB) row: 128 packed batch results per vreg, no padded lanes.
    y = jnp.sum(h * w7_ref[...], axis=0, keepdims=True) + b7_ref[...]   # (1, TB)
    o_ref[...] = y.astype(o_ref.dtype)


def _round_up(n, m):
    return (n + m - 1) // m * m


def _pad2d(a, rows, cols):
    return jnp.pad(a, ((0, rows - a.shape[0]), (0, cols - a.shape[1])))


def toy_model_forward(x, params, *, block_b=4096, matmul_dtype=jnp.float32,
                      core_parallel=False):
    """x: (B, 2) f32. params: PyTorch-layout weights (out, in) and biases (out,).

    matmul_dtype=jnp.bfloat16 selects the bf16 MXU path for fc3/fc5 (f32 accumulation).
    core_parallel=True uses pltpu.CORE_PARALLEL on the batch grid axis to engage both
    v7x TensorCores (leave False on single-TC chips or tiny grids).
    """
    B = x.shape[0]
    # Balanced batch tile: ceil(B / nsteps) rounded to a lane multiple, so tail
    # padding is bounded (< TB) instead of up to ~block_b for unlucky batch sizes.
    nsteps = max(1, -(-B // block_b))
    TB = _round_up(max(-(-B // nsteps), 1), LANE)
    B_pad = _round_up(B, TB)
    grid = (B_pad // TB,)

    # Stream x transposed: (2, B_pad); each tile is (2, TB) -> 8 B/row of HBM reads.
    x_t = jnp.pad(x.astype(jnp.float32).T, ((0, 0), (0, B_pad - B)))

    # Zero-pad parameters: padded rows/cols/bias entries stay exactly 0 through
    # tanh/relu and never leak into real lanes; padded batch columns are sliced off.
    w1 = _pad2d(params["w1"], HID_PAD, 2)                     # (128, 2)
    b1 = _pad2d(params["b1"][:, None], HID_PAD, 1)            # (128, 1)
    w3 = _pad2d(params["w3"], HID_PAD, HID_PAD)               # (128, 128)
    b3 = _pad2d(params["b3"][:, None], HID_PAD, 1)
    w5 = _pad2d(params["w5"], HID_PAD, HID_PAD)
    b5 = _pad2d(params["b5"][:, None], HID_PAD, 1)
    w7 = _pad2d(params["w7"].T, HID_PAD, 1)                   # (128, 1) column
    b7 = params["b7"].reshape(1, 1).astype(jnp.float32)
    # bf16 path: pre-cast the two big weight tiles once here (no in-kernel per-step
    # casts, halves their DMA). No-op for the default f32 path.
    w3 = w3.astype(matmul_dtype)
    w5 = w5.astype(matmul_dtype)

    def resident(arr):
        # Whole array as one block with a constant index_map: DMA'd once, VMEM-resident.
        return pl.BlockSpec(arr.shape, lambda i: (0, 0))

    dim_sem = (pltpu.CORE_PARALLEL,) if core_parallel else ("parallel",)

    param_bytes = sum(int(a.size) * a.dtype.itemsize
                      for a in (w1, b1, w3, b3, w5, b5, w7, b7))
    cost = pl.CostEstimate(
        flops=int(2 * B_pad * (2 * HID_PAD + 2 * HID_PAD * HID_PAD + HID_PAD)),
        transcendentals=int(B_pad * HID_PAD),
        bytes_accessed=int(3 * B_pad * 4 + param_bytes),
    )

    out_row = pl.pallas_call(
        toy_mlp_kernel,
        out_shape=jax.ShapeDtypeStruct((1, B_pad), jnp.float32),
        grid=grid,
        in_specs=[
            pl.BlockSpec((2, TB), lambda i: (0, i)),          # x tile, pipelined
            resident(w1), resident(b1),
            resident(w3), resident(b3),
            resident(w5), resident(b5),
            resident(w7), resident(b7),
        ],
        out_specs=pl.BlockSpec((1, TB), lambda i: (0, i)),    # packed lane-dense output
        compiler_params=pltpu.CompilerParams(dimension_semantics=dim_sem),
        cost_estimate=cost,
    )(x_t, w1, b1, w3, b3, w5, b5, w7, b7)

    return out_row[0, :B].reshape(B, 1)


def init_params(key, sigma=0.1):
    """PyTorch layout: weight (out_features, in_features), bias (out_features,).
    Weights ~ N(0, sigma) (torch.nn.init.normal_); biases keep the nn.Linear default
    U(-1/sqrt(fan_in), 1/sqrt(fan_in))."""
    shapes = {"1": (100, 2), "3": (100, 100), "5": (100, 100), "7": (1, 100)}
    params = {}
    keys = jax.random.split(key, 2 * len(shapes))
    for i, (name, (fan_out, fan_in)) in enumerate(shapes.items()):
        wk, bk = keys[2 * i], keys[2 * i + 1]
        params[f"w{name}"] = sigma * jax.random.normal(
            wk, (fan_out, fan_in), dtype=jnp.float32)
        bound = 1.0 / float(fan_in) ** 0.5
        params[f"b{name}"] = jax.random.uniform(
            bk, (fan_out,), dtype=jnp.float32, minval=-bound, maxval=bound)
    return params


def reference_forward(x, params):
    h = jnp.tanh(x @ params["w1"].T + params["b1"])
    h = jnp.maximum(h @ params["w3"].T + params["b3"], 0.0)
    h = jnp.maximum(h @ params["w5"].T + params["b5"], 0.0)
    return h @ params["w7"].T + params["b7"]


if __name__ == "__main__":
    key = jax.random.PRNGKey(0)
    pkey, xkey = jax.random.split(key)
    params = init_params(pkey, sigma=0.1)

    # Small shape consistent with the module: batch=8, in_features=2.
    B = 8
    x = jax.random.normal(xkey, (B, 2), dtype=jnp.float32)
    out = jax.block_until_ready(toy_model_forward(x, params))
    ref = reference_forward(x, params)
    assert out.shape == (B, 1), out.shape
    assert jnp.allclose(out, ref, atol=1e-4, rtol=1e-4), "mismatch vs JAX reference (B=8)"

    # Multi-step grid with a non-multiple batch tail (tail is zero-padded, sliced off).
    B2 = 300
    x2 = jax.random.normal(jax.random.PRNGKey(1), (B2, 2), dtype=jnp.float32)
    out2 = jax.block_until_ready(toy_model_forward(x2, params, block_b=128))
    ref2 = reference_forward(x2, params)
    assert out2.shape == (B2, 1), out2.shape
    assert jnp.allclose(out2, ref2, atol=1e-4, rtol=1e-4), "mismatch vs JAX reference (B=300)"

    # bf16 MXU path (weights pre-cast in wrapper, f32 accumulation): loose-tolerance smoke test.
    out_bf16 = jax.block_until_ready(
        toy_model_forward(x2, params, block_b=128, matmul_dtype=jnp.bfloat16))
    assert out_bf16.shape == (B2, 1), out_bf16.shape
    assert jnp.allclose(out_bf16, ref2, atol=1e-1, rtol=1e-1), "bf16 path diverged"

    print("KERNEL_OK")
</pallas_src>

<mosaic_0001>
module attributes {stable_mosaic.version = 11 : i64} {
  func.func @toy_mlp_kernel(%arg0: i32, %arg1: memref<2x128xf32, #tpu.memory_space<vmem>>, %arg2: memref<128x2xf32, #tpu.memory_space<vmem>>, %arg3: memref<128x1xf32, #tpu.memory_space<vmem>>, %arg4: memref<128x128xf32, #tpu.memory_space<vmem>>, %arg5: memref<128x1xf32, #tpu.memory_space<vmem>>, %arg6: memref<128x128xf32, #tpu.memory_space<vmem>>, %arg7: memref<128x1xf32, #tpu.memory_space<vmem>>, %arg8: memref<128x1xf32, #tpu.memory_space<vmem>>, %arg9: memref<1x1xf32, #tpu.memory_space<vmem>>, %arg10: memref<1x128xf32, #tpu.memory_space<vmem>>) attributes {dimension_semantics = [#tpu.dimension_semantics<parallel>], iteration_bounds = array<i64: 1>, scalar_prefetch = 0 : i64, scratch_operands = 0 : i64, tpu.core_type = #tpu.core_type<tc>, window_params = [{transform_indices = @transform_0, window_bounds = array<i64: 2, 128>}, {pipeline_mode = #tpu.pipeline_mode<synchronous>, transform_indices = @transform_1, window_bounds = array<i64: 128, 2>}, {pipeline_mode = #tpu.pipeline_mode<synchronous>, transform_indices = @transform_2, window_bounds = array<i64: 128, 1>}, {pipeline_mode = #tpu.pipeline_mode<synchronous>, transform_indices = @transform_3, window_bounds = array<i64: 128, 128>}, {pipeline_mode = #tpu.pipeline_mode<synchronous>, transform_indices = @transform_4, window_bounds = array<i64: 128, 1>}, {pipeline_mode = #tpu.pipeline_mode<synchronous>, transform_indices = @transform_5, window_bounds = array<i64: 128, 128>}, {pipeline_mode = #tpu.pipeline_mode<synchronous>, transform_indices = @transform_6, window_bounds = array<i64: 128, 1>}, {pipeline_mode = #tpu.pipeline_mode<synchronous>, transform_indices = @transform_7, window_bounds = array<i64: 128, 1>}, {pipeline_mode = #tpu.pipeline_mode<synchronous>, transform_indices = @transform_8, window_bounds = array<i64: 1, 1>}, {transform_indices = @transform_9, window_bounds = array<i64: 1, 128>}]} {
    %c0 = arith.constant 0 : index
    %c0_0 = arith.constant 0 : index
    %0 = vector.load %arg1[%c0, %c0_0] : memref<2x128xf32, #tpu.memory_space<vmem>>, vector<2x128xf32>
    %c0_1 = arith.constant 0 : index
    %c0_2 = arith.constant 0 : index
    %1 = vector.load %arg2[%c0_1, %c0_2] : memref<128x2xf32, #tpu.memory_space<vmem>>, vector<128x2xf32>
    %2 = vector.extract_strided_slice %1 {offsets = [0, 0], sizes = [128, 1], strides = [1, 1]} : vector<128x2xf32> to vector<128x1xf32>
    %3 = vector.extract_strided_slice %0 {offsets = [0, 0], sizes = [1, 128], strides = [1, 1]} : vector<2x128xf32> to vector<1x128xf32>
    %4 = vector.broadcast %2 : vector<128x1xf32> to vector<128x128xf32>
    %5 = vector.broadcast %3 : vector<1x128xf32> to vector<128x128xf32>
    %6 = arith.mulf %4, %5 : vector<128x128xf32>
    %7 = vector.extract_strided_slice %1 {offsets = [0, 1], sizes = [128, 1], strides = [1, 1]} : vector<128x2xf32> to vector<128x1xf32>
    %8 = vector.extract_strided_slice %0 {offsets = [1, 0], sizes = [1, 128], strides = [1, 1]} : vector<2x128xf32> to vector<1x128xf32>
    %9 = vector.broadcast %7 : vector<128x1xf32> to vector<128x128xf32>
    %10 = vector.broadcast %8 : vector<1x128xf32> to vector<128x128xf32>
    %11 = arith.mulf %9, %10 : vector<128x128xf32>
    %12 = arith.addf %6, %11 : vector<128x128xf32>
    %c0_3 = arith.constant 0 : index
    %c0_4 = arith.constant 0 : index
    %13 = vector.load %arg3[%c0_3, %c0_4] : memref<128x1xf32, #tpu.memory_space<vmem>>, vector<128x1xf32>
    %14 = vector.broadcast %13 : vector<128x1xf32> to vector<128x128xf32>
    %15 = arith.addf %12, %14 : vector<128x128xf32>
    %16 = math.tanh %15 : vector<128x128xf32>
    %c0_5 = arith.constant 0 : index
    %c0_6 = arith.constant 0 : index
    %17 = vector.load %arg4[%c0_5, %c0_6] : memref<128x128xf32, #tpu.memory_space<vmem>>, vector<128x128xf32>
    %cst = arith.constant dense<0.000000e+00> : vector<128x128xf32>
    %18 = tpu.matmul %17, %16, %cst {dimension_numbers = #tpu.dot_dimension_numbers<[1], [0], [0], [1], [0, 0, 1, 1], [], []>} : vector<128x128xf32>, vector<128x128xf32>, vector<128x128xf32> -> vector<128x128xf32>
    %c0_7 = arith.constant 0 : index
    %c0_8 = arith.constant 0 : index
    %19 = vector.load %arg5[%c0_7, %c0_8] : memref<128x1xf32, #tpu.memory_space<vmem>>, vector<128x1xf32>
    %20 = vector.broadcast %19 : vector<128x1xf32> to vector<128x128xf32>
    %21 = arith.addf %18, %20 : vector<128x128xf32>
    %cst_9 = arith.constant 0.000000e+00 : f32
    %22 = vector.broadcast %cst_9 : f32 to vector<128x128xf32>
    %23 = arith.maximumf %21, %22 : vector<128x128xf32>
    %c0_10 = arith.constant 0 : index
    %c0_11 = arith.constant 0 : index
    %24 = vector.load %arg6[%c0_10, %c0_11] : memref<128x128xf32, #tpu.memory_space<vmem>>, vector<128x128xf32>
    %cst_12 = arith.constant dense<0.000000e+00> : vector<128x128xf32>
    %25 = tpu.matmul %24, %23, %cst_12 {dimension_numbers = #tpu.dot_dimension_numbers<[1], [0], [0], [1], [0, 0, 1, 1], [], []>} : vector<128x128xf32>, vector<128x128xf32>, vector<128x128xf32> -> vector<128x128xf32>
    %c0_13 = arith.constant 0 : index
    %c0_14 = arith.constant 0 : index
    %26 = vector.load %arg7[%c0_13, %c0_14] : memref<128x1xf32, #tpu.memory_space<vmem>>, vector<128x1xf32>
    %27 = vector.broadcast %26 : vector<128x1xf32> to vector<128x128xf32>
    %28 = arith.addf %25, %27 : vector<128x128xf32>
    %cst_15 = arith.constant 0.000000e+00 : f32
    %29 = vector.broadcast %cst_15 : f32 to vector<128x128xf32>
    %30 = arith.maximumf %28, %29 : vector<128x128xf32>
    %c0_16 = arith.constant 0 : index
    %c0_17 = arith.constant 0 : index
    %31 = vector.load %arg8[%c0_16, %c0_17] : memref<128x1xf32, #tpu.memory_space<vmem>>, vector<128x1xf32>
    %32 = vector.broadcast %31 : vector<128x1xf32> to vector<128x128xf32>
    %33 = arith.mulf %30, %32 : vector<128x128xf32>
    %cst_18 = arith.constant dense<0.000000e+00> : vector<128xf32>
    %34 = vector.multi_reduction <add>, %33, %cst_18 [0] : vector<128x128xf32> to vector<128xf32>
    %35 = vector.shape_cast %34 : vector<128xf32> to vector<1x128xf32>
    %c0_19 = arith.constant 0 : index
    %c0_20 = arith.constant 0 : index
    %36 = vector.load %arg9[%c0_19, %c0_20] : memref<1x1xf32, #tpu.memory_space<vmem>>, vector<1x1xf32>
    %37 = vector.broadcast %36 : vector<1x1xf32> to vector<1x128xf32>
    %38 = arith.addf %35, %37 : vector<1x128xf32>
    %c0_21 = arith.constant 0 : index
    %c0_22 = arith.constant 0 : index
    %39 = vector.load %arg10[%c0_21, %c0_22] : memref<1x128xf32, #tpu.memory_space<vmem>>, vector<1x128xf32>
    tpu.vector_store %arg10[%c0_21, %c0_22], %38 {strides = array<i32>} : memref<1x128xf32, #tpu.memory_space<vmem>>, vector<1x128xf32>,
    return
  }
  func.func @transform_0(%arg0: i32) -> (i32, i32) {
    %c0_i32 = arith.constant 0 : i32
    %c0_i32_0 = arith.constant 0 : i32
    return %c0_i32, %arg0 : i32, i32
  }
  func.func @transform_1(%arg0: i32) -> (i32, i32) {
    %c0_i32 = arith.constant 0 : i32
    %c0_i32_0 = arith.constant 0 : i32
    %c0_i32_1 = arith.constant 0 : i32
    return %c0_i32, %c0_i32_0 : i32, i32
  }
  func.func @transform_2(%arg0: i32) -> (i32, i32) {
    %c0_i32 = arith.constant 0 : i32
    %c0_i32_0 = arith.constant 0 : i32
    %c0_i32_1 = arith.constant 0 : i32
    return %c0_i32, %c0_i32_0 : i32, i32
  }
  func.func @transform_3(%arg0: i32) -> (i32, i32) {
    %c0_i32 = arith.constant 0 : i32
    %c0_i32_0 = arith.constant 0 : i32
    %c0_i32_1 = arith.constant 0 : i32
    return %c0_i32, %c0_i32_0 : i32, i32
  }
  func.func @transform_4(%arg0: i32) -> (i32, i32) {
    %c0_i32 = arith.constant 0 : i32
    %c0_i32_0 = arith.constant 0 : i32
    %c0_i32_1 = arith.constant 0 : i32
    return %c0_i32, %c0_i32_0 : i32, i32
  }
  func.func @transform_5(%arg0: i32) -> (i32, i32) {
    %c0_i32 = arith.constant 0 : i32
    %c0_i32_0 = arith.constant 0 : i32
    %c0_i32_1 = arith.constant 0 : i32
    return %c0_i32, %c0_i32_0 : i32, i32
  }
  func.func @transform_6(%arg0: i32) -> (i32, i32) {
    %c0_i32 = arith.constant 0 : i32
    %c0_i32_0 = arith.constant 0 : i32
    %c0_i32_1 = arith.constant 0 : i32
    return %c0_i32, %c0_i32_0 : i32, i32
  }
  func.func @transform_7(%arg0: i32) -> (i32, i32) {
    %c0_i32 = arith.constant 0 : i32
    %c0_i32_0 = arith.constant 0 : i32
    %c0_i32_1 = arith.constant 0 : i32
    return %c0_i32, %c0_i32_0 : i32, i32
  }
  func.func @transform_8(%arg0: i32) -> (i32, i32) {
    %c0_i32 = arith.constant 0 : i32
    %c0_i32_0 = arith.constant 0 : i32
    %c0_i32_1 = arith.constant 0 : i32
    return %c0_i32, %c0_i32_0 : i32, i32
  }
  func.func @transform_9(%arg0: i32) -> (i32, i32) {
    %c0_i32 = arith.constant 0 : i32
    %c0_i32_0 = arith.constant 0 : i32
    return %c0_i32, %arg0 : i32, i32
  }
}

</mosaic_0001>

<llo_original>
// kernel: tpu_custom_call.1
$region0: #{tpu_custom_call.1}
  #allocation0 [shape = 'u32[]', space=smem, size = 0x4, offset = 0x4, fixed_abs, tag = 'smem constant byte address 0x4 - core index']
  #allocation1 [shape = 'u32[72,128]{1,0:T(1,128)}', space=vmem, size = 0x9000, scoped, tag = 'internal scratch']
  #allocation2 [shape = 'f32[1,1]{1,0:T(1,128)S(1)}', space=vmem, size = 0x200, scoped, tag = 'scoped memory for tpu_custom_call.1']
  %s0 = inlined_call_operand.vmem [shape: f32[2,128], index: 0, kind: input, shape index: {}]
  %s1 = inlined_call_operand.vmem [shape: f32[128,2], index: 1, kind: input, shape index: {}]
  %s2 = inlined_call_operand.vmem [shape: f32[128,1], index: 2, kind: input, shape index: {}]
  %s3 = inlined_call_operand.vmem [shape: f32[128,128], index: 3, kind: input, shape index: {}]
  %s4 = inlined_call_operand.vmem [shape: f32[128,1], index: 4, kind: input, shape index: {}]
  %s5 = inlined_call_operand.vmem [shape: f32[128,128], index: 5, kind: input, shape index: {}]
  %s6 = inlined_call_operand.vmem [shape: f32[128,1], index: 6, kind: input, shape index: {}]
  %s7 = inlined_call_operand.vmem [shape: f32[128,1], index: 7, kind: input, shape index: {}]
  %s8 = inlined_call_operand.<no memory space> [shape: f32[1,1], index: 8, kind: input, shape index: {}]
  %s9 = inlined_call_operand.hbm [shape: f32[1,128], index: 9, kind: output, shape index: {}]
  %s10 = sld [smem:[#allocation0]]
  $region46: #{tpu_custom_call.1} parent=0
    _
  %s12 = ssub.s32 1, %s10
  %s13 = scalar_select 0, %s12, %s10
  %v14 = vstv %s8
  %15 = vst [vmem:[#allocation2] sm:$0x1] %v14
  $region1: #{tpu_custom_call.1} parent=0
    #allocation3 [shape = 'u8[512]{0}', space=vmem, size = 0x400, scoped, tag = 'output window, operand 0, single buffered']
    #allocation4 [shape = 's32[1]{0}', space=sflag, size = 0x4, scoped, tag = 'scoped memory for tpu_custom_call.1']
    %16 = vsyncpa [#allocation4], 0
    // Predicated region
    $region2: #{tpu_custom_call.1} parent=1 // pred_check
      _
    $region3: #{tpu_custom_call.1} parent=1 // pred_check_branch
      %18 = sbr.rel (0) target = $region5
    $region4: #{tpu_custom_call.1} parent=1 // pred_region
      _
    $region5: #{tpu_custom_call.1} parent=1 // pred_fallthru
      _
    // Predicated region
    $region6: #{tpu_custom_call.1} parent=1 // pred_check
      _
    $region7: #{tpu_custom_call.1} parent=1 // pred_check_branch
      %20 = sbr.rel (0) target = $region9
    $region8: #{tpu_custom_call.1} parent=1 // pred_region
      _
    $region9: #{tpu_custom_call.1} parent=1 // pred_fallthru
      _
    // Predicated region
    $region10: #{tpu_custom_call.1} parent=1 // pred_check
      _
    $region11: #{tpu_custom_call.1} parent=1 // pred_check_branch
      %22 = sbr.rel (0) target = $region13
    $region12: #{tpu_custom_call.1} parent=1 // pred_region
      _
    $region13: #{tpu_custom_call.1} parent=1 // pred_fallthru
      _
    // Predicated region
    $region14: #{tpu_custom_call.1} parent=1 // pred_check
      _
    $region15: #{tpu_custom_call.1} parent=1 // pred_check_branch
      %24 = sbr.rel (0) target = $region17
    $region16: #{tpu_custom_call.1} parent=1 // pred_region
      _
    $region17: #{tpu_custom_call.1} parent=1 // pred_fallthru
      _
    // Predicated region
    $region18: #{tpu_custom_call.1} parent=1 // pred_check
      _
    $region19: #{tpu_custom_call.1} parent=1 // pred_check_branch
      %26 = sbr.rel (0) target = $region21
    $region20: #{tpu_custom_call.1} parent=1 // pred_region
      _
    $region21: #{tpu_custom_call.1} parent=1 // pred_fallthru
      _
    // Predicated region
    $region22: #{tpu_custom_call.1} parent=1 // pred_check
      _
    $region23: #{tpu_custom_call.1} parent=1 // pred_check_branch
      %28 = sbr.rel (0) target = $region25
    $region24: #{tpu_custom_call.1} parent=1 // pred_region
      _
    $region25: #{tpu_custom_call.1} parent=1 // pred_fallthru
      _
    // Predicated region
    $region26: #{tpu_custom_call.1} parent=1 // pred_check
      _
    $region27: #{tpu_custom_call.1} parent=1 // pred_check_branch
      %30 = sbr.rel (0) target = $region29
    $region28: #{tpu_custom_call.1} parent=1 // pred_region
      _
    $region29: #{tpu_custom_call.1} parent=1 // pred_fallthru
      _
    // Predicated region
    $region30: #{tpu_custom_call.1} parent=1 // pred_check
      _
    $region31: #{tpu_custom_call.1} parent=1 // pred_check_branch
      %32 = sbr.rel (0) target = $region33
    $region32: #{tpu_custom_call.1} parent=1 // pred_region
      _
    $region33: #{tpu_custom_call.1} parent=1 // pred_fallthru
      _
    // Predicated region
    $region34: #{tpu_custom_call.1} parent=1 // pred_check
      _
    $region35: #{tpu_custom_call.1} parent=1 // pred_check_branch
      %34 = sbr.rel (0) target = $region37
    $region36: #{tpu_custom_call.1} parent=1 // pred_region
      _
    $region37: #{tpu_custom_call.1} parent=1 // pred_fallthru
      _
    %v35 = vld [vmem:[%s0] sm:$0x3]
    %v36 = vld [vmem:[%s1] sm:$0xff]
    %v37 = vld [vmem:[%s1 + $0x8] sm:$0xff]
    %v38 = vld [vmem:[%s1 + $0x10] sm:$0xff]
    %v39 = vld [vmem:[%s1 + $0x18] sm:$0xff]
    %v40 = vld [vmem:[%s1 + $0x20] sm:$0xff]
    %v41 = vld [vmem:[%s1 + $0x28] sm:$0xff]
    %v42 = vld [vmem:[%s1 + $0x30] sm:$0xff]
    %v43 = vld [vmem:[%s1 + $0x38] sm:$0xff]
    %v44 = vld [vmem:[%s1 + $0x40] sm:$0xff]
    %v45 = vld [vmem:[%s1 + $0x48] sm:$0xff]
    %v46 = vld [vmem:[%s1 + $0x50] sm:$0xff]
    %v47 = vld [vmem:[%s1 + $0x58] sm:$0xff]
    %v48 = vld [vmem:[%s1 + $0x60] sm:$0xff]
    %v49 = vld [vmem:[%s1 + $0x68] sm:$0xff]
    %v50 = vld [vmem:[%s1 + $0x70] sm:$0xff]
    %v51 = vld [vmem:[%s1 + $0x78] sm:$0xff]
    %53 = vset.pattern.permute.xlu0 0
    %54 = vperm.xlu0 %53, %v36
    %v55 = vpop.permute.xlu0 %54
    %58 = vset.pattern.permute.xlu0 0
    %59 = vperm.xlu0 %58, %v37
    %v60 = vpop.permute.xlu0 %59
    %63 = vset.pattern.permute.xlu0 0
    %64 = vperm.xlu0 %63, %v38
    %v65 = vpop.permute.xlu0 %64
    %68 = vset.pattern.permute.xlu0 0
    %69 = vperm.xlu0 %68, %v39
    %v70 = vpop.permute.xlu0 %69
    %73 = vset.pattern.permute.xlu0 0
    %74 = vperm.xlu0 %73, %v40
    %v75 = vpop.permute.xlu0 %74
    %78 = vset.pattern.permute.xlu0 0
    %79 = vperm.xlu0 %78, %v41
    %v80 = vpop.permute.xlu0 %79
    %83 = vset.pattern.permute.xlu0 0
    %84 = vperm.xlu0 %83, %v42
    %v85 = vpop.permute.xlu0 %84
    %88 = vset.pattern.permute.xlu0 0
    %89 = vperm.xlu0 %88, %v43
    %v90 = vpop.permute.xlu0 %89
    %93 = vset.pattern.permute.xlu0 0
    %94 = vperm.xlu0 %93, %v44
    %v95 = vpop.permute.xlu0 %94
    %98 = vset.pattern.permute.xlu0 0
    %99 = vperm.xlu0 %98, %v45
    %v100 = vpop.permute.xlu0 %99
    %103 = vset.pattern.permute.xlu0 0
    %104 = vperm.xlu0 %103, %v46
    %v105 = vpop.permute.xlu0 %104
    %108 = vset.pattern.permute.xlu0 0
    %109 = vperm.xlu0 %108, %v47
    %v110 = vpop.permute.xlu0 %109
    %113 = vset.pattern.permute.xlu0 0
    %114 = vperm.xlu0 %113, %v48
    %v115 = vpop.permute.xlu0 %114
    %118 = vset.pattern.permute.xlu0 0
    %119 = vperm.xlu0 %118, %v49
    %v120 = vpop.permute.xlu0 %119
    %123 = vset.pattern.permute.xlu0 0
    %124 = vperm.xlu0 %123, %v50
    %v125 = vpop.permute.xlu0 %124
    %128 = vset.pattern.permute.xlu0 0
    %129 = vperm.xlu0 %128, %v51
    %v130 = vpop.permute.xlu0 %129
    %v132 = vperm.slane %v35, 0
    %v133 = vmul.f32 %v55, %v132
    %v134 = vmul.f32 %v60, %v132
    %v135 = vmul.f32 %v65, %v132
    %v136 = vmul.f32 %v70, %v132
    %v137 = vmul.f32 %v75, %v132
    %v138 = vmul.f32 %v80, %v132
    %v139 = vmul.f32 %v85, %v132
    %v140 = vmul.f32 %v90, %v132
    %v141 = vmul.f32 %v95, %v132
    %v142 = vmul.f32 %v100, %v132
    %v143 = vmul.f32 %v105, %v132
    %v144 = vmul.f32 %v110, %v132
    %v145 = vmul.f32 %v115, %v132
    %v146 = vmul.f32 %v120, %v132
    %v147 = vmul.f32 %v125, %v132
    %v148 = vmul.f32 %v130, %v132
    %149 = vset.pattern.permute.xlu0 1
    %150 = vperm.xlu0 %149, %v36
    %v151 = vpop.permute.xlu0 %150
    %153 = vset.pattern.permute.xlu0 1
    %154 = vperm.xlu0 %153, %v37
    %v155 = vpop.permute.xlu0 %154
    %157 = vset.pattern.permute.xlu0 1
    %158 = vperm.xlu0 %157, %v38
    %v159 = vpop.permute.xlu0 %158
    %161 = vset.pattern.permute.xlu0 1
    %162 = vperm.xlu0 %161, %v39
    %v163 = vpop.permute.xlu0 %162
    %165 = vset.pattern.permute.xlu0 1
    %166 = vperm.xlu0 %165, %v40
    %v167 = vpop.permute.xlu0 %166
    %169 = vset.pattern.permute.xlu0 1
    %170 = vperm.xlu0 %169, %v41
    %v171 = vpop.permute.xlu0 %170
    %173 = vset.pattern.permute.xlu0 1
    %174 = vperm.xlu0 %173, %v42
    %v175 = vpop.permute.xlu0 %174
    %177 = vset.pattern.permute.xlu0 1
    %178 = vperm.xlu0 %177, %v43
    %v179 = vpop.permute.xlu0 %178
    %181 = vset.pattern.permute.xlu0 1
    %182 = vperm.xlu0 %181, %v44
    %v183 = vpop.permute.xlu0 %182
    %185 = vset.pattern.permute.xlu0 1
    %186 = vperm.xlu0 %185, %v45
    %v187 = vpop.permute.xlu0 %186
    %189 = vset.pattern.permute.xlu0 1
    %190 = vperm.xlu0 %189, %v46
    %v191 = vpop.permute.xlu0 %190
    %193 = vset.pattern.permute.xlu0 1
    %194 = vperm.xlu0 %193, %v47
    %v195 = vpop.permute.xlu0 %194
    %197 = vset.pattern.permute.xlu0 1
    %198 = vperm.xlu0 %197, %v48
    %v199 = vpop.permute.xlu0 %198
    %201 = vset.pattern.permute.xlu0 1
    %202 = vperm.xlu0 %201, %v49
    %v203 = vpop.permute.xlu0 %202
    %205 = vset.pattern.permute.xlu0 1
    %206 = vperm.xlu0 %205, %v50
    %v207 = vpop.permute.xlu0 %206
    %209 = vset.pattern.permute.xlu0 1
    %210 = vperm.xlu0 %209, %v51
    %v211 = vpop.permute.xlu0 %210
    %v213 = vperm.slane %v35, 1
    %v214 = vmul.f32 %v151, %v213
    %v215 = vmul.f32 %v155, %v213
    %v216 = vmul.f32 %v159, %v213
    %v217 = vmul.f32 %v163, %v213
    %v218 = vmul.f32 %v167, %v213
    %v219 = vmul.f32 %v171, %v213
    %v220 = vmul.f32 %v175, %v213
    %v221 = vmul.f32 %v179, %v213
    %v222 = vmul.f32 %v183, %v213
    %v223 = vmul.f32 %v187, %v213
    %v224 = vmul.f32 %v191, %v213
    %v225 = vmul.f32 %v195, %v213
    %v226 = vmul.f32 %v199, %v213
    %v227 = vmul.f32 %v203, %v213
    %v228 = vmul.f32 %v207, %v213
    %v229 = vmul.f32 %v211, %v213
    %v230 = vadd.f32 %v133, %v214
    %v231 = vadd.f32 %v134, %v215
    %v232 = vadd.f32 %v135, %v216
    %v233 = vadd.f32 %v136, %v217
    %v234 = vadd.f32 %v137, %v218
    %v235 = vadd.f32 %v138, %v219
    %v236 = vadd.f32 %v139, %v220
    %v237 = vadd.f32 %v140, %v221
    %v238 = vadd.f32 %v141, %v222
    %v239 = vadd.f32 %v142, %v223
    %v240 = vadd.f32 %v143, %v224
    %v241 = vadd.f32 %v144, %v225
    %v242 = vadd.f32 %v145, %v226
    %v243 = vadd.f32 %v146, %v227
    %v244 = vadd.f32 %v147, %v228
    %v245 = vadd.f32 %v148, %v229
    %v246 = vld [vmem:[%s2] sm:$0xff]
    %v247 = vld [vmem:[%s2 + $0x8] sm:$0xff]
    %v248 = vld [vmem:[%s2 + $0x10] sm:$0xff]
    %v249 = vld [vmem:[%s2 + $0x18] sm:$0xff]
    %v250 = vld [vmem:[%s2 + $0x20] sm:$0xff]
    %v251 = vld [vmem:[%s2 + $0x28] sm:$0xff]
    %v252 = vld [vmem:[%s2 + $0x30] sm:$0xff]
    %v253 = vld [vmem:[%s2 + $0x38] sm:$0xff]
    %v254 = vld [vmem:[%s2 + $0x40] sm:$0xff]
    %v255 = vld [vmem:[%s2 + $0x48] sm:$0xff]
    %v256 = vld [vmem:[%s2 + $0x50] sm:$0xff]
    %v257 = vld [vmem:[%s2 + $0x58] sm:$0xff]
    %v258 = vld [vmem:[%s2 + $0x60] sm:$0xff]
    %v259 = vld [vmem:[%s2 + $0x68] sm:$0xff]
    %v260 = vld [vmem:[%s2 + $0x70] sm:$0xff]
    %v261 = vld [vmem:[%s2 + $0x78] sm:$0xff]
    %263 = vset.pattern.permute.xlu0 0
    %264 = vperm.xlu0 %263, %v246
    %v265 = vpop.permute.xlu0 %264
    %268 = vset.pattern.permute.xlu0 0
    %269 = vperm.xlu0 %268, %v247
    %v270 = vpop.permute.xlu0 %269
    %273 = vset.pattern.permute.xlu0 0
    %274 = vperm.xlu0 %273, %v248
    %v275 = vpop.permute.xlu0 %274
    %278 = vset.pattern.permute.xlu0 0
    %279 = vperm.xlu0 %278, %v249
    %v280 = vpop.permute.xlu0 %279
    %283 = vset.pattern.permute.xlu0 0
    %284 = vperm.xlu0 %283, %v250
    %v285 = vpop.permute.xlu0 %284
    %288 = vset.pattern.permute.xlu0 0
    %289 = vperm.xlu0 %288, %v251
    %v290 = vpop.permute.xlu0 %289
    %293 = vset.pattern.permute.xlu0 0
    %294 = vperm.xlu0 %293, %v252
    %v295 = vpop.permute.xlu0 %294
    %298 = vset.pattern.permute.xlu0 0
    %299 = vperm.xlu0 %298, %v253
    %v300 = vpop.permute.xlu0 %299
    %303 = vset.pattern.permute.xlu0 0
    %304 = vperm.xlu0 %303, %v254
    %v305 = vpop.permute.xlu0 %304
    %308 = vset.pattern.permute.xlu0 0
    %309 = vperm.xlu0 %308, %v255
    %v310 = vpop.permute.xlu0 %309
    %313 = vset.pattern.permute.xlu0 0
    %314 = vperm.xlu0 %313, %v256
    %v315 = vpop.permute.xlu0 %314
    %318 = vset.pattern.permute.xlu0 0
    %319 = vperm.xlu0 %318, %v257
    %v320 = vpop.permute.xlu0 %319
    %323 = vset.pattern.permute.xlu0 0
    %324 = vperm.xlu0 %323, %v258
    %v325 = vpop.permute.xlu0 %324
    %328 = vset.pattern.permute.xlu0 0
    %329 = vperm.xlu0 %328, %v259
    %v330 = vpop.permute.xlu0 %329
    %333 = vset.pattern.permute.xlu0 0
    %334 = vperm.xlu0 %333, %v260
    %v335 = vpop.permute.xlu0 %334
    %338 = vset.pattern.permute.xlu0 0
    %339 = vperm.xlu0 %338, %v261
    %v340 = vpop.permute.xlu0 %339
    %v342 = vadd.f32 %v230, %v265
    %v343 = vadd.f32 %v231, %v270
    %v344 = vadd.f32 %v232, %v275
    %v345 = vadd.f32 %v233, %v280
    %v346 = vadd.f32 %v234, %v285
    %v347 = vadd.f32 %v235, %v290
    %v348 = vadd.f32 %v236, %v295
    %v349 = vadd.f32 %v237, %v300
    %v350 = vadd.f32 %v238, %v305
    %v351 = vadd.f32 %v239, %v310
    %v352 = vadd.f32 %v240, %v315
    %v353 = vadd.f32 %v241, %v320
    %v354 = vadd.f32 %v242, %v325
    %v355 = vadd.f32 %v243, %v330
    %v356 = vadd.f32 %v244, %v335
    %v357 = vadd.f32 %v245, %v340
    %v358 = vtanh.pop %v342
    %v359 = vtanh.pop %v343
    %v360 = vtanh.pop %v344
    %v361 = vtanh.pop %v345
    %v362 = vtanh.pop %v346
    %v363 = vtanh.pop %v347
    %v364 = vtanh.pop %v348
    %v365 = vtanh.pop %v349
    %v366 = vtanh.pop %v350
    %v367 = vtanh.pop %v351
    %v368 = vtanh.pop %v352
    %v369 = vtanh.pop %v353
    %v370 = vtanh.pop %v354
    %v371 = vtanh.pop %v355
    %v372 = vtanh.pop %v356
    %v373 = vtanh.pop %v357
    %v374 = vld [vmem:[%s3] sm:$0xff]
    %v375 = vld [vmem:[%s3 + $0x8] sm:$0xff]
    %v376 = vld [vmem:[%s3 + $0x10] sm:$0xff]
    %v377 = vld [vmem:[%s3 + $0x18] sm:$0xff]
    %v378 = vld [vmem:[%s3 + $0x20] sm:$0xff]
    %v379 = vld [vmem:[%s3 + $0x28] sm:$0xff]
    %v380 = vld [vmem:[%s3 + $0x30] sm:$0xff]
    %v381 = vld [vmem:[%s3 + $0x38] sm:$0xff]
    %v382 = vld [vmem:[%s3 + $0x40] sm:$0xff]
    %v383 = vld [vmem:[%s3 + $0x48] sm:$0xff]
    %v384 = vld [vmem:[%s3 + $0x50] sm:$0xff]
    %v385 = vld [vmem:[%s3 + $0x58] sm:$0xff]
    %v386 = vld [vmem:[%s3 + $0x60] sm:$0xff]
    %v387 = vld [vmem:[%s3 + $0x68] sm:$0xff]
    %v388 = vld [vmem:[%s3 + $0x70] sm:$0xff]
    %v389 = vld [vmem:[%s3 + $0x78] sm:$0xff]
    %v390 = vld [vmem:[%s4] sm:$0xff]
    %v391 = vld [vmem:[%s4 + $0x8] sm:$0xff]
    %v392 = vld [vmem:[%s4 + $0x10] sm:$0xff]
    %v393 = vld [vmem:[%s4 + $0x18] sm:$0xff]
    %v394 = vld [vmem:[%s4 + $0x20] sm:$0xff]
    %v395 = vld [vmem:[%s4 + $0x28] sm:$0xff]
    %v396 = vld [vmem:[%s4 + $0x30] sm:$0xff]
    %v397 = vld [vmem:[%s4 + $0x38] sm:$0xff]
    %v398 = vld [vmem:[%s4 + $0x40] sm:$0xff]
    %v399 = vld [vmem:[%s4 + $0x48] sm:$0xff]
    %v400 = vld [vmem:[%s4 + $0x50] sm:$0xff]
    %v401 = vld [vmem:[%s4 + $0x58] sm:$0xff]
    %v402 = vld [vmem:[%s4 + $0x60] sm:$0xff]
    %v403 = vld [vmem:[%s4 + $0x68] sm:$0xff]
    %v404 = vld [vmem:[%s4 + $0x70] sm:$0xff]
    %v405 = vld [vmem:[%s4 + $0x78] sm:$0xff]
    %407 = vset.pattern.permute.xlu0 0
    %408 = vperm.xlu0 %407, %v390
    %v409 = vpop.permute.xlu0 %408
    %412 = vset.pattern.permute.xlu0 0
    %413 = vperm.xlu0 %412, %v391
    %v414 = vpop.permute.xlu0 %413
    %417 = vset.pattern.permute.xlu0 0
    %418 = vperm.xlu0 %417, %v392
    %v419 = vpop.permute.xlu0 %418
    %422 = vset.pattern.permute.xlu0 0
    %423 = vperm.xlu0 %422, %v393
    %v424 = vpop.permute.xlu0 %423
    %427 = vset.pattern.permute.xlu0 0
    %428 = vperm.xlu0 %427, %v394
    %v429 = vpop.permute.xlu0 %428
    %432 = vset.pattern.permute.xlu0 0
    %433 = vperm.xlu0 %432, %v395
    %v434 = vpop.permute.xlu0 %433
    %437 = vset.pattern.permute.xlu0 0
    %438 = vperm.xlu0 %437, %v396
    %v439 = vpop.permute.xlu0 %438
    %442 = vset.pattern.permute.xlu0 0
    %443 = vperm.xlu0 %442, %v397
    %v444 = vpop.permute.xlu0 %443
    %447 = vset.pattern.permute.xlu0 0
    %448 = vperm.xlu0 %447, %v398
    %v449 = vpop.permute.xlu0 %448
    %452 = vset.pattern.permute.xlu0 0
    %453 = vperm.xlu0 %452, %v399
    %v454 = vpop.permute.xlu0 %453
    %457 = vset.pattern.permute.xlu0 0
    %458 = vperm.xlu0 %457, %v400
    %v459 = vpop.permute.xlu0 %458
    %462 = vset.pattern.permute.xlu0 0
    %463 = vperm.xlu0 %462, %v401
    %v464 = vpop.permute.xlu0 %463
    %467 = vset.pattern.permute.xlu0 0
    %468 = vperm.xlu0 %467, %v402
    %v469 = vpop.permute.xlu0 %468
    %472 = vset.pattern.permute.xlu0 0
    %473 = vperm.xlu0 %472, %v403
    %v474 = vpop.permute.xlu0 %473
    %477 = vset.pattern.permute.xlu0 0
    %478 = vperm.xlu0 %477, %v404
    %v479 = vpop.permute.xlu0 %478
    %482 = vset.pattern.permute.xlu0 0
    %483 = vperm.xlu0 %482, %v405
    %v484 = vpop.permute.xlu0 %483
    %486 = vmatpush.msra.mxu0 %v373
    %487 = vmatpush.msra.mxu0 %v372
    %488 = vmatpush.msra.mxu0 %v371
    %489 = vmatpush.msra.mxu0 %v370
    %490 = vmatpush.msra.mxu0 %v369
    %491 = vmatpush.msra.mxu0 %v368
    %492 = vmatpush.msra.mxu0 %v367
    %493 = vmatpush.msra.mxu0 %v366
    %494 = vmatpush.msra.mxu0 %v365
    %495 = vmatpush.msra.mxu0 %v364
    %496 = vmatpush.msra.mxu0 %v363
    %497 = vmatpush.msra.mxu0 %v362
    %498 = vmatpush.msra.mxu0 %v361
    %499 = vmatpush.msra.mxu0 %v360
    %500 = vmatpush.msra.mxu0 %v359
    %501 = vmatpush.msra.mxu0 %v358
    %502 = vmatmul.f32.gmra.mxu0 %v374
    %v503 = vpop.f32.mrf.mxu0
    %v504 = vadd.f32 %v409, %v503
    %505 = vmatmul.f32.gmra.mxu0 %v375
    %v506 = vpop.f32.mrf.mxu0
    %v507 = vadd.f32 %v414, %v506
    %508 = vmatmul.f32.gmra.mxu0 %v376
    %v509 = vpop.f32.mrf.mxu0
    %v510 = vadd.f32 %v419, %v509
    %511 = vmatmul.f32.gmra.mxu0 %v377
    %v512 = vpop.f32.mrf.mxu0
    %v513 = vadd.f32 %v424, %v512
    %514 = vmatmul.f32.gmra.mxu0 %v378
    %v515 = vpop.f32.mrf.mxu0
    %v516 = vadd.f32 %v429, %v515
    %517 = vmatmul.f32.gmra.mxu0 %v379
    %v518 = vpop.f32.mrf.mxu0
    %v519 = vadd.f32 %v434, %v518
    %520 = vmatmul.f32.gmra.mxu0 %v380
    %v521 = vpop.f32.mrf.mxu0
    %v522 = vadd.f32 %v439, %v521
    %523 = vmatmul.f32.gmra.mxu0 %v381
    %v524 = vpop.f32.mrf.mxu0
    %v525 = vadd.f32 %v444, %v524
    %526 = vmatmul.f32.gmra.mxu0 %v382
    %v527 = vpop.f32.mrf.mxu0
    %v528 = vadd.f32 %v449, %v527
    %529 = vmatmul.f32.gmra.mxu0 %v383
    %v530 = vpop.f32.mrf.mxu0
    %v531 = vadd.f32 %v454, %v530
    %532 = vmatmul.f32.gmra.mxu0 %v384
    %v533 = vpop.f32.mrf.mxu0
    %v534 = vadd.f32 %v459, %v533
    %535 = vmatmul.f32.gmra.mxu0 %v385
    %v536 = vpop.f32.mrf.mxu0
    %v537 = vadd.f32 %v464, %v536
    %538 = vmatmul.f32.gmra.mxu0 %v386
    %v539 = vpop.f32.mrf.mxu0
    %v540 = vadd.f32 %v469, %v539
    %541 = vmatmul.f32.gmra.mxu0 %v387
    %v542 = vpop.f32.mrf.mxu0
    %v543 = vadd.f32 %v474, %v542
    %544 = vmatmul.f32.gmra.mxu0 %v388
    %v545 = vpop.f32.mrf.mxu0
    %v546 = vadd.f32 %v479, %v545
    %547 = vmatmul.f32.gmra.mxu0 %v389
    %v548 = vpop.f32.mrf.mxu0
    %v549 = vadd.f32 %v484, %v548
    %550 = vdwg.mxu0
    %v551 = vmax.f32 %v504, 0.0
    %v552 = vmax.f32 %v507, 0.0
    %v553 = vmax.f32 %v510, 0.0
    %v554 = vmax.f32 %v513, 0.0
    %v555 = vmax.f32 %v516, 0.0
    %v556 = vmax.f32 %v519, 0.0
    %v557 = vmax.f32 %v522, 0.0
    %v558 = vmax.f32 %v525, 0.0
    %v559 = vmax.f32 %v528, 0.0
    %v560 = vmax.f32 %v531, 0.0
    %v561 = vmax.f32 %v534, 0.0
    %v562 = vmax.f32 %v537, 0.0
    %v563 = vmax.f32 %v540, 0.0
    %v564 = vmax.f32 %v543, 0.0
    %v565 = vmax.f32 %v546, 0.0
    %v566 = vmax.f32 %v549, 0.0
    %v567 = vld [vmem:[%s5] sm:$0xff]
    %v568 = vld [vmem:[%s5 + $0x8] sm:$0xff]
    %v569 = vld [vmem:[%s5 + $0x10] sm:$0xff]
    %v570 = vld [vmem:[%s5 + $0x18] sm:$0xff]
    %v571 = vld [vmem:[%s5 + $0x20] sm:$0xff]
    %v572 = vld [vmem:[%s5 + $0x28] sm:$0xff]
    %v573 = vld [vmem:[%s5 + $0x30] sm:$0xff]
    %v574 = vld [vmem:[%s5 + $0x38] sm:$0xff]
    %v575 = vld [vmem:[%s5 + $0x40] sm:$0xff]
    %v576 = vld [vmem:[%s5 + $0x48] sm:$0xff]
    %v577 = vld [vmem:[%s5 + $0x50] sm:$0xff]
    %v578 = vld [vmem:[%s5 + $0x58] sm:$0xff]
    %v579 = vld [vmem:[%s5 + $0x60] sm:$0xff]
    %v580 = vld [vmem:[%s5 + $0x68] sm:$0xff]
    %v581 = vld [vmem:[%s5 + $0x70] sm:$0xff]
    %v582 = vld [vmem:[%s5 + $0x78] sm:$0xff]
    %v583 = vld [vmem:[%s6] sm:$0xff]
    %v584 = vld [vmem:[%s6 + $0x8] sm:$0xff]
    %v585 = vld [vmem:[%s6 + $0x10] sm:$0xff]
    %v586 = vld [vmem:[%s6 + $0x18] sm:$0xff]
    %v587 = vld [vmem:[%s6 + $0x20] sm:$0xff]
    %v588 = vld [vmem:[%s6 + $0x28] sm:$0xff]
    %v589 = vld [vmem:[%s6 + $0x30] sm:$0xff]
    %v590 = vld [vmem:[%s6 + $0x38] sm:$0xff]
    %v591 = vld [vmem:[%s6 + $0x40] sm:$0xff]
    %v592 = vld [vmem:[%s6 + $0x48] sm:$0xff]
    %v593 = vld [vmem:[%s6 + $0x50] sm:$0xff]
    %v594 = vld [vmem:[%s6 + $0x58] sm:$0xff]
    %v595 = vld [vmem:[%s6 + $0x60] sm:$0xff]
    %v596 = vld [vmem:[%s6 + $0x68] sm:$0xff]
    %v597 = vld [vmem:[%s6 + $0x70] sm:$0xff]
    %v598 = vld [vmem:[%s6 + $0x78] sm:$0xff]
    %600 = vset.pattern.permute.xlu0 0
    %601 = vperm.xlu0 %600, %v583
    %v602 = vpop.permute.xlu0 %601
    %605 = vset.pattern.permute.xlu0 0
    %606 = vperm.xlu0 %605, %v584
    %v607 = vpop.permute.xlu0 %606
    %610 = vset.pattern.permute.xlu0 0
    %611 = vperm.xlu0 %610, %v585
    %v612 = vpop.permute.xlu0 %611
    %615 = vset.pattern.permute.xlu0 0
    %616 = vperm.xlu0 %615, %v586
    %v617 = vpop.permute.xlu0 %616
    %620 = vset.pattern.permute.xlu0 0
    %621 = vperm.xlu0 %620, %v587
    %v622 = vpop.permute.xlu0 %621
    %625 = vset.pattern.permute.xlu0 0
    %626 = vperm.xlu0 %625, %v588
    %v627 = vpop.permute.xlu0 %626
    %630 = vset.pattern.permute.xlu0 0
    %631 = vperm.xlu0 %630, %v589
    %v632 = vpop.permute.xlu0 %631
    %635 = vset.pattern.permute.xlu0 0
    %636 = vperm.xlu0 %635, %v590
    %v637 = vpop.permute.xlu0 %636
    %640 = vset.pattern.permute.xlu0 0
    %641 = vperm.xlu0 %640, %v591
    %v642 = vpop.permute.xlu0 %641
    %645 = vset.pattern.permute.xlu0 0
    %646 = vperm.xlu0 %645, %v592
    %v647 = vpop.permute.xlu0 %646
    %650 = vset.pattern.permute.xlu0 0
    %651 = vperm.xlu0 %650, %v593
    %v652 = vpop.permute.xlu0 %651
    %655 = vset.pattern.permute.xlu0 0
    %656 = vperm.xlu0 %655, %v594
    %v657 = vpop.permute.xlu0 %656
    %660 = vset.pattern.permute.xlu0 0
    %661 = vperm.xlu0 %660, %v595
    %v662 = vpop.permute.xlu0 %661
    %665 = vset.pattern.permute.xlu0 0
    %666 = vperm.xlu0 %665, %v596
    %v667 = vpop.permute.xlu0 %666
    %670 = vset.pattern.permute.xlu0 0
    %671 = vperm.xlu0 %670, %v597
    %v672 = vpop.permute.xlu0 %671
    %675 = vset.pattern.permute.xlu0 0
    %676 = vperm.xlu0 %675, %v598
    %v677 = vpop.permute.xlu0 %676
    %679 = vmatpush.msra.mxu0 %v566
    %680 = vmatpush.msra.mxu0 %v565
    %681 = vmatpush.msra.mxu0 %v564
    %682 = vmatpush.msra.mxu0 %v563
    %683 = vmatpush.msra.mxu0 %v562
    %684 = vmatpush.msra.mxu0 %v561
    %685 = vmatpush.msra.mxu0 %v560
    %686 = vmatpush.msra.mxu0 %v559
    %687 = vmatpush.msra.mxu0 %v558
    %688 = vmatpush.msra.mxu0 %v557
    %689 = vmatpush.msra.mxu0 %v556
    %690 = vmatpush.msra.mxu0 %v555
    %691 = vmatpush.msra.mxu0 %v554
    %692 = vmatpush.msra.mxu0 %v553
    %693 = vmatpush.msra.mxu0 %v552
    %694 = vmatpush.msra.mxu0 %v551
    %695 = vmatmul.f32.gmra.mxu0 %v567
    %v696 = vpop.f32.mrf.mxu0
    %v697 = vadd.f32 %v602, %v696
    %698 = vmatmul.f32.gmra.mxu0 %v568
    %v699 = vpop.f32.mrf.mxu0
    %v700 = vadd.f32 %v607, %v699
    %701 = vmatmul.f32.gmra.mxu0 %v569
    %v702 = vpop.f32.mrf.mxu0
    %v703 = vadd.f32 %v612, %v702
    %704 = vmatmul.f32.gmra.mxu0 %v570
    %v705 = vpop.f32.mrf.mxu0
    %v706 = vadd.f32 %v617, %v705
    %707 = vmatmul.f32.gmra.mxu0 %v571
    %v708 = vpop.f32.mrf.mxu0
    %v709 = vadd.f32 %v622, %v708
    %710 = vmatmul.f32.gmra.mxu0 %v572
    %v711 = vpop.f32.mrf.mxu0
    %v712 = vadd.f32 %v627, %v711
    %713 = vmatmul.f32.gmra.mxu0 %v573
    %v714 = vpop.f32.mrf.mxu0
    %v715 = vadd.f32 %v632, %v714
    %716 = vmatmul.f32.gmra.mxu0 %v574
    %v717 = vpop.f32.mrf.mxu0
    %v718 = vadd.f32 %v637, %v717
    %719 = vmatmul.f32.gmra.mxu0 %v575
    %v720 = vpop.f32.mrf.mxu0
    %v721 = vadd.f32 %v642, %v720
    %722 = vmatmul.f32.gmra.mxu0 %v576
    %v723 = vpop.f32.mrf.mxu0
    %v724 = vadd.f32 %v647, %v723
    %725 = vmatmul.f32.gmra.mxu0 %v577
    %v726 = vpop.f32.mrf.mxu0
    %v727 = vadd.f32 %v652, %v726
    %728 = vmatmul.f32.gmra.mxu0 %v578
    %v729 = vpop.f32.mrf.mxu0
    %v730 = vadd.f32 %v657, %v729
    %731 = vmatmul.f32.gmra.mxu0 %v579
    %v732 = vpop.f32.mrf.mxu0
    %v733 = vadd.f32 %v662, %v732
    %734 = vmatmul.f32.gmra.mxu0 %v580
    %v735 = vpop.f32.mrf.mxu0
    %v736 = vadd.f32 %v667, %v735
    %737 = vmatmul.f32.gmra.mxu0 %v581
    %v738 = vpop.f32.mrf.mxu0
    %v739 = vadd.f32 %v672, %v738
    %740 = vmatmul.f32.gmra.mxu0 %v582
    %v741 = vpop.f32.mrf.mxu0
    %v742 = vadd.f32 %v677, %v741
    %743 = vdwg.mxu0
    %v744 = vmax.f32 %v697, 0.0
    %v745 = vmax.f32 %v700, 0.0
    %v746 = vmax.f32 %v703, 0.0
    %v747 = vmax.f32 %v706, 0.0
    %v748 = vmax.f32 %v709, 0.0
    %v749 = vmax.f32 %v712, 0.0
    %v750 = vmax.f32 %v715, 0.0
    %v751 = vmax.f32 %v718, 0.0
    %v752 = vmax.f32 %v721, 0.0
    %v753 = vmax.f32 %v724, 0.0
    %v754 = vmax.f32 %v727, 0.0
    %v755 = vmax.f32 %v730, 0.0
    %v756 = vmax.f32 %v733, 0.0
    %v757 = vmax.f32 %v736, 0.0
    %v758 = vmax.f32 %v739, 0.0
    %v759 = vmax.f32 %v742, 0.0
    %v760 = vld [vmem:[%s7] sm:$0xff]
    %v761 = vld [vmem:[%s7 + $0x8] sm:$0xff]
    %v762 = vld [vmem:[%s7 + $0x10] sm:$0xff]
    %v763 = vld [vmem:[%s7 + $0x18] sm:$0xff]
    %v764 = vld [vmem:[%s7 + $0x20] sm:$0xff]
    %v765 = vld [vmem:[%s7 + $0x28] sm:$0xff]
    %v766 = vld [vmem:[%s7 + $0x30] sm:$0xff]
    %v767 = vld [vmem:[%s7 + $0x38] sm:$0xff]
    %v768 = vld [vmem:[%s7 + $0x40] sm:$0xff]
    %v769 = vld [vmem:[%s7 + $0x48] sm:$0xff]
    %v770 = vld [vmem:[%s7 + $0x50] sm:$0xff]
    %v771 = vld [vmem:[%s7 + $0x58] sm:$0xff]
    %v772 = vld [vmem:[%s7 + $0x60] sm:$0xff]
    %v773 = vld [vmem:[%s7 + $0x68] sm:$0xff]
    %v774 = vld [vmem:[%s7 + $0x70] sm:$0xff]
    %v775 = vld [vmem:[%s7 + $0x78] sm:$0xff]
    %777 = vset.pattern.permute.xlu0 0
    %778 = vperm.xlu0 %777, %v760
    %v779 = vpop.permute.xlu0 %778
    %782 = vset.pattern.permute.xlu0 0
    %783 = vperm.xlu0 %782, %v761
    %v784 = vpop.permute.xlu0 %783
    %787 = vset.pattern.permute.xlu0 0
    %788 = vperm.xlu0 %787, %v762
    %v789 = vpop.permute.xlu0 %788
    %792 = vset.pattern.permute.xlu0 0
    %793 = vperm.xlu0 %792, %v763
    %v794 = vpop.permute.xlu0 %793
    %797 = vset.pattern.permute.xlu0 0
    %798 = vperm.xlu0 %797, %v764
    %v799 = vpop.permute.xlu0 %798
    %802 = vset.pattern.permute.xlu0 0
    %803 = vperm.xlu0 %802, %v765
    %v804 = vpop.permute.xlu0 %803
    %807 = vset.pattern.permute.xlu0 0
    %808 = vperm.xlu0 %807, %v766
    %v809 = vpop.permute.xlu0 %808
    %812 = vset.pattern.permute.xlu0 0
    %813 = vperm.xlu0 %812, %v767
    %v814 = vpop.permute.xlu0 %813
    %817 = vset.pattern.permute.xlu0 0
    %818 = vperm.xlu0 %817, %v768
    %v819 = vpop.permute.xlu0 %818
    %822 = vset.pattern.permute.xlu0 0
    %823 = vperm.xlu0 %822, %v769
    %v824 = vpop.permute.xlu0 %823
    %827 = vset.pattern.permute.xlu0 0
    %828 = vperm.xlu0 %827, %v770
    %v829 = vpop.permute.xlu0 %828
    %832 = vset.pattern.permute.xlu0 0
    %833 = vperm.xlu0 %832, %v771
    %v834 = vpop.permute.xlu0 %833
    %837 = vset.pattern.permute.xlu0 0
    %838 = vperm.xlu0 %837, %v772
    %v839 = vpop.permute.xlu0 %838
    %842 = vset.pattern.permute.xlu0 0
    %843 = vperm.xlu0 %842, %v773
    %v844 = vpop.permute.xlu0 %843
    %847 = vset.pattern.permute.xlu0 0
    %848 = vperm.xlu0 %847, %v774
    %v849 = vpop.permute.xlu0 %848
    %852 = vset.pattern.permute.xlu0 0
    %853 = vperm.xlu0 %852, %v775
    %v854 = vpop.permute.xlu0 %853
    %v856 = vmul.f32 %v744, %v779
    %v857 = vmul.f32 %v745, %v784
    %v858 = vmul.f32 %v746, %v789
    %v859 = vmul.f32 %v747, %v794
    %v860 = vmul.f32 %v748, %v799
    %v861 = vmul.f32 %v749, %v804
    %v862 = vmul.f32 %v750, %v809
    %v863 = vmul.f32 %v751, %v814
    %v864 = vmul.f32 %v752, %v819
    %v865 = vmul.f32 %v753, %v824
    %v866 = vmul.f32 %v754, %v829
    %v867 = vmul.f32 %v755, %v834
    %v868 = vmul.f32 %v756, %v839
    %v869 = vmul.f32 %v757, %v844
    %v870 = vmul.f32 %v758, %v849
    %v871 = vmul.f32 %v759, %v854
    %v872 = vadd.f32 %v856, %v857
    %v873 = vadd.f32 %v872, %v858
    %v874 = vadd.f32 %v873, %v859
    %v875 = vadd.f32 %v874, %v860
    %v876 = vadd.f32 %v875, %v861
    %v877 = vadd.f32 %v876, %v862
    %v878 = vadd.f32 %v877, %v863
    %v879 = vadd.f32 %v878, %v864
    %v880 = vadd.f32 %v879, %v865
    %v881 = vadd.f32 %v880, %v866
    %v882 = vadd.f32 %v881, %v867
    %v883 = vadd.f32 %v882, %v868
    %v884 = vadd.f32 %v883, %v869
    %v885 = vadd.f32 %v884, %v870
    %v886 = vadd.f32 %v885, %v871
    %v887 = vrot.slane %v886, 4
    %v888 = vadd.f32 %v886, %v887
    %v889 = vrot.slane %v888, 2
    %v890 = vadd.f32 %v888, %v889
    %v891 = vrot.slane %v890, 1
    %v892 = vadd.f32 %v890, %v891
    %v893 = vld [vmem:[#allocation2] sm:$0x1]
    %895 = vset.pattern.permute.xlu0 0
    %896 = vperm.xlu0 %895, %v893
    %v897 = vpop.permute.xlu0 %896
    %v899 = vperm.slane %v897, 0
    %v900 = vadd.f32 %v892, %v899
    %901 = vst [vmem:[#allocation3] sm:$0x1] %v900
    // Predicated region
    $region38: #{tpu_custom_call.1} parent=1 // pred_check
      _
    $region39: #{tpu_custom_call.1} parent=1 // pred_check_branch
      %903 = sbr.rel (0) target = $region41
    $region40: #{tpu_custom_call.1} parent=1 // pred_region
      %905 = vsyncadd [#allocation4], 0
      %s907 = sshll.u32 [#allocation3], 4
      %s908 = int_to_ptr.vmem [resolvable:$true] %s907
      %s909 = sshll.u32 %s9, 4
      %s910 = int_to_ptr.hbm [resolvable:$true] %s909
      %912 = dma.vmem_to_hbm [thread:$0]  %s908, 16, %s910, [#allocation4]
    $region41: #{tpu_custom_call.1} parent=1 // pred_fallthru
      _
    // Predicated region
    $region42: #{tpu_custom_call.1} parent=1 // pred_check
      _
    $region43: #{tpu_custom_call.1} parent=1 // pred_check_branch
      %914 = sbr.rel (0) target = $region45
    $region44: #{tpu_custom_call.1} parent=1 // pred_region
      %916 = dma.done [#allocation4], 16
    $region45: #{tpu_custom_call.1} parent=1 // pred_fallthru
      _
    %917 = vsyncpa [#allocation4], 1

</llo_original>
